<compile_context>
chip_gen: v7x
topology: tpu7x:2x2x1
jax: 0.10.0
libtpu: 0.0.40
codegen_flags: <defaults>
</compile_context>

<pallas_src>
import jax
import jax.numpy as jnp
from jax.experimental import pallas as pl
from jax.experimental.pallas import tpu as pltpu

SUBLANE = 8          # f32 sublane count
MAX_BATCH_TILE = 512  # mem-bound sweet spot (85%+ of HBM roofline)


def _round_up(x, m):
    return (x + m - 1) // m * m


# ----------------------------------------------------------------------------
# Pallas kernel: fused linear + bias + relu (the wrapped module's forward)
# ----------------------------------------------------------------------------
def _linear_relu_kernel(x_ref, w_ref, b_ref, o_ref):
    # x: [tb, D_in] caller dtype; cast to bf16 in-register (VPU) so x is read
    # from HBM exactly once and no separate XLA cast kernel is launched.
    x = x_ref[...].astype(jnp.bfloat16)
    # bf16 x bf16 -> f32 accumulate on the MXU.
    y = jnp.dot(x, w_ref[...], preferred_element_type=jnp.float32)
    y = y + b_ref[...]                       # f32 epilogue (v5e-friendly)
    o_ref[...] = jnp.maximum(y, 0.0).astype(o_ref.dtype)


def linear_relu_pallas(x, w_bf16, b_f32row):
    """Fused Linear+ReLU over the full batch via a single pallas_call.

    x:        [B, D_in]   (any float dtype; cast to bf16 inside the kernel)
    w_bf16:   [D_in, D_out] bf16 (cached, VMEM-resident across batch tiles)
    b_f32row: [1, D_out]  f32   (cached)
    returns:  [B, D_out]  in x.dtype
    """
    B, D_in = x.shape
    D_out = w_bf16.shape[1]
    out_dtype = x.dtype

    # Batch tile: single block when B fits; otherwise 512-row tiles
    # (sublane-aligned). No forced extra grid programs.
    tb = min(MAX_BATCH_TILE, _round_up(B, SUBLANE))
    b_p = _round_up(B, tb)
    n_tiles = b_p // tb

    # Only pad the batch axis, and only when strictly required.
    xp = x if b_p == B else jnp.zeros((b_p, D_in), x.dtype).at[:B].set(x)

    # Advisory cost for XLA's scheduler: real (unpadded) work, not padded slab.
    cost = pl.CostEstimate(
        flops=2 * B * D_in * D_out,
        transcendentals=0,
        bytes_accessed=(B * D_in * x.dtype.itemsize
                        + D_in * D_out * 2            # bf16 weight
                        + D_out * 4                   # f32 bias
                        + B * D_out * jnp.dtype(out_dtype).itemsize),
    )

    out = pl.pallas_call(
        _linear_relu_kernel,
        out_shape=jax.ShapeDtypeStruct((b_p, D_out), out_dtype),
        grid=(n_tiles,),
        in_specs=[
            # x tile per grid step; last dim == full array dim (32), so no
            # 128-lane padding is needed in HBM.
            pl.BlockSpec((tb, D_in), lambda i: (i, 0)),
            # weight / bias: constant index_map -> VMEM-resident across steps.
            pl.BlockSpec((D_in, D_out), lambda i: (0, 0)),
            pl.BlockSpec((1, D_out), lambda i: (0, 0)),
        ],
        out_specs=pl.BlockSpec((tb, D_out), lambda i: (i, 0)),
        compiler_params=pltpu.CompilerParams(
            dimension_semantics=("parallel",),
        ),
        cost_estimate=cost,
    )(xp, w_bf16, b_f32row)

    # Padded batch rows compute ReLU(bias) != 0, so they must be stripped.
    # When b_p == B (the common small-batch case) this is a no-op: the kernel
    # output is returned directly with no extra HBM pass.
    return out if b_p == B else out[:B]


# ----------------------------------------------------------------------------
# DDP wrapper semantics (forward only)
# ----------------------------------------------------------------------------
class DistributedDataParallelPythonBucketsPallas:
    """Forward-only analog of pytext's DistributedDataParallelPythonBuckets.

    scatter(dim=0) + per-replica apply + gather(dim=0) is mathematically the
    wrapped module applied to the full batch, so forward issues exactly one
    fused Pallas kernel (no per-shard launches, no split/concatenate).

    Precision contract (deliberate): matmul inputs are bf16, accumulation and
    the bias/ReLU epilogue are f32.
    """

    def __init__(self, params, device_ids=None, dim=0):
        if device_ids is None:
            device_ids = [0]
        self.device_ids = list(device_ids)
        self.dim = dim
        # Replica 0 owns the canonical params; _sync_params() broadcasts them.
        self.modules_params = [dict(params) for _ in self.device_ids]
        self._w_src = None
        self._b_src = None
        self._w_bf16 = None
        self._b_f32 = None
        self._sync_params()

    def _sync_params(self):
        # broadcast_coalesced from replica 0 (identity math on immutable arrays).
        src = self.modules_params[0]
        for i in range(1, len(self.modules_params)):
            self.modules_params[i] = dict(src)
        # Cache kernel-ready parameter layouts; only re-cast when the canonical
        # params actually change (hoists the per-call pad/cast XLA ops).
        if src["weight"] is not self._w_src or src["bias"] is not self._b_src:
            self._w_src = src["weight"]
            self._b_src = src["bias"]
            self._w_bf16 = jnp.asarray(src["weight"], jnp.bfloat16)
            self._b_f32 = jnp.asarray(src["bias"], jnp.float32).reshape(1, -1)
        # TODO(synk): dist._dist_broadcast_coalesced and the bucketed gradient
        # all-reduce / grad hooks are backward/comm-only; no forward Pallas analog.

    def forward(self, x):
        self._sync_params()
        # DDP forward == module(full batch): one fused kernel over all rows.
        return linear_relu_pallas(x, self._w_bf16, self._b_f32)

    __call__ = forward


# ----------------------------------------------------------------------------
# main
# ----------------------------------------------------------------------------
if __name__ == "__main__":
    key = jax.random.PRNGKey(0)
    kx, kw, kb, kx2 = jax.random.split(key, 4)

    B, D_in, D_out = 8, 32, 32
    x = jax.random.normal(kx, (B, D_in), dtype=jnp.float32)
    weight = jax.random.normal(kw, (D_in, D_out), dtype=jnp.float32) * 0.1
    bias = jax.random.normal(kb, (D_out,), dtype=jnp.float32) * 0.1

    ddp = DistributedDataParallelPythonBucketsPallas(
        {"weight": weight, "bias": bias}, device_ids=[0, 1], dim=0
    )

    # Reference matches the documented precision contract:
    # bf16 matmul inputs, f32 accumulate / bias / ReLU.
    def ref_fn(xin):
        xb = xin.astype(jnp.bfloat16).astype(jnp.float32)
        wb = weight.astype(jnp.bfloat16).astype(jnp.float32)
        return jnp.maximum(xb @ wb + bias[None, :], 0.0)

    # Small batch: single-block path, no batch padding, no output slice.
    out = jax.block_until_ready(ddp(x))
    assert out.shape == (B, D_out)
    assert out.dtype == x.dtype
    assert jnp.allclose(out, ref_fn(x), atol=1e-4, rtol=1e-4), "small-batch mismatch"

    # Larger batch: exercises the tiled grid path with batch padding + slice.
    B2 = 520
    x2 = jax.random.normal(kx2, (B2, D_in), dtype=jnp.float32)
    out2 = jax.block_until_ready(ddp(x2))
    assert out2.shape == (B2, D_out)
    assert jnp.allclose(out2, ref_fn(x2), atol=1e-4, rtol=1e-4), "tiled-batch mismatch"

    print("KERNEL_OK")
</pallas_src>

<mosaic_0001>
module attributes {stable_mosaic.version = 11 : i64} {
  func.func @_linear_relu_kernel(%arg0: i32, %arg1: memref<8x32xf32, #tpu.memory_space<vmem>>, %arg2: memref<32x32xbf16, #tpu.memory_space<vmem>>, %arg3: memref<1x32xf32, #tpu.memory_space<vmem>>, %arg4: memref<8x32xf32, #tpu.memory_space<vmem>>) attributes {dimension_semantics = [#tpu.dimension_semantics<parallel>], iteration_bounds = array<i64: 1>, scalar_prefetch = 0 : i64, scratch_operands = 0 : i64, tpu.core_type = #tpu.core_type<tc>, window_params = [{transform_indices = @transform_0, window_bounds = array<i64: 8, 32>}, {pipeline_mode = #tpu.pipeline_mode<synchronous>, transform_indices = @transform_1, window_bounds = array<i64: 32, 32>}, {pipeline_mode = #tpu.pipeline_mode<synchronous>, transform_indices = @transform_2, window_bounds = array<i64: 1, 32>}, {transform_indices = @transform_3, window_bounds = array<i64: 8, 32>}]} {
    %c0 = arith.constant 0 : index
    %c0_0 = arith.constant 0 : index
    %0 = vector.load %arg1[%c0, %c0_0] : memref<8x32xf32, #tpu.memory_space<vmem>>, vector<8x32xf32>
    %1 = arith.truncf %0 : vector<8x32xf32> to vector<8x32xbf16>
    %c0_1 = arith.constant 0 : index
    %c0_2 = arith.constant 0 : index
    %2 = vector.load %arg2[%c0_1, %c0_2] : memref<32x32xbf16, #tpu.memory_space<vmem>>, vector<32x32xbf16>
    %cst = arith.constant dense<0.000000e+00> : vector<8x32xf32>
    %3 = tpu.matmul %1, %2, %cst {dimension_numbers = #tpu.dot_dimension_numbers<[1], [0], [0], [1], [0, 0, 1, 1], [], []>} : vector<8x32xbf16>, vector<32x32xbf16>, vector<8x32xf32> -> vector<8x32xf32>
    %c0_3 = arith.constant 0 : index
    %c0_4 = arith.constant 0 : index
    %4 = vector.load %arg3[%c0_3, %c0_4] : memref<1x32xf32, #tpu.memory_space<vmem>>, vector<1x32xf32>
    %5 = vector.broadcast %4 : vector<1x32xf32> to vector<8x32xf32>
    %6 = arith.addf %3, %5 : vector<8x32xf32>
    %cst_5 = arith.constant 0.000000e+00 : f32
    %7 = vector.broadcast %cst_5 : f32 to vector<8x32xf32>
    %8 = arith.maximumf %6, %7 : vector<8x32xf32>
    %c0_6 = arith.constant 0 : index
    %c0_7 = arith.constant 0 : index
    %9 = vector.load %arg4[%c0_6, %c0_7] : memref<8x32xf32, #tpu.memory_space<vmem>>, vector<8x32xf32>
    tpu.vector_store %arg4[%c0_6, %c0_7], %8 {strides = array<i32>} : memref<8x32xf32, #tpu.memory_space<vmem>>, vector<8x32xf32>,
    return
  }
  func.func @transform_0(%arg0: i32) -> (i32, i32) {
    %c0_i32 = arith.constant 0 : i32
    %c0_i32_0 = arith.constant 0 : i32
    return %arg0, %c0_i32 : i32, i32
  }
  func.func @transform_1(%arg0: i32) -> (i32, i32) {
    %c0_i32 = arith.constant 0 : i32
    %c0_i32_0 = arith.constant 0 : i32
    %c0_i32_1 = arith.constant 0 : i32
    return %c0_i32, %c0_i32_0 : i32, i32
  }
  func.func @transform_2(%arg0: i32) -> (i32, i32) {
    %c0_i32 = arith.constant 0 : i32
    %c0_i32_0 = arith.constant 0 : i32
    %c0_i32_1 = arith.constant 0 : i32
    return %c0_i32, %c0_i32_0 : i32, i32
  }
  func.func @transform_3(%arg0: i32) -> (i32, i32) {
    %c0_i32 = arith.constant 0 : i32
    %c0_i32_0 = arith.constant 0 : i32
    return %arg0, %c0_i32 : i32, i32
  }
}

</mosaic_0001>

<llo_original>
// kernel: tpu_custom_call.1
$region0: #{tpu_custom_call.1}
  #allocation0 [shape = 'u32[]', space=smem, size = 0x4, offset = 0x4, fixed_abs, tag = 'smem constant byte address 0x4 - core index']
  #allocation1 [shape = 'u32[144,128]{1,0:T(1,128)}', space=vmem, size = 0x12000, scoped, tag = 'internal scratch']
  %s0 = inlined_call_operand.hbm [shape: f32[8,32], index: 0, kind: input, shape index: {}]
  %s1 = inlined_call_operand.hbm [shape: bf16[32,32], index: 1, kind: input, shape index: {}]
  %s2 = inlined_call_operand.vmem [shape: f32[1,32], index: 2, kind: input, shape index: {}]
  %s3 = inlined_call_operand.hbm [shape: f32[8,32], index: 3, kind: output, shape index: {}]
  %s4 = sld [smem:[#allocation0]]
  $region30: #{tpu_custom_call.1} parent=0
    _
  %s6 = ssub.s32 1, %s4
  %s7 = scalar_select 0, %s6, %s4
  $region1: #{tpu_custom_call.1} parent=0
    #allocation2 [shape = 'u8[4096]{0}', space=vmem, size = 0x1000, scoped, tag = 'input window, operand 0, single buffered']
    #allocation3 [shape = 's32[1]{0}', space=sflag, size = 0x4, scoped, tag = 'scoped memory for tpu_custom_call.1']
    #allocation4 [shape = 's32[1]{0}', space=sflag, size = 0x4, scoped, tag = 'scoped memory for tpu_custom_call.1']
    #allocation5 [shape = 'u8[8192]{0}', space=vmem, size = 0x2000, scoped, tag = 'input window, operand 1, single buffered']
    #allocation6 [shape = 's32[1]{0}', space=sflag, size = 0x4, scoped, tag = 'scoped memory for tpu_custom_call.1']
    #allocation7 [shape = 'u8[4096]{0}', space=vmem, size = 0x1000, scoped, tag = 'output window, operand 0, single buffered']
    %8 = vsyncpa [#allocation3], 0
    %9 = vsyncpa [#allocation6], 0
    %10 = vsyncpa [#allocation4], 0
    // Predicated region
    $region2: #{tpu_custom_call.1} parent=1 // pred_check
      _
    $region3: #{tpu_custom_call.1} parent=1 // pred_check_branch
      %12 = sbr.rel (0) target = $region5
    $region4: #{tpu_custom_call.1} parent=1 // pred_region
      %s14 = ssub.s32 128, 128
      %15 = vsyncadd [#allocation3], %s14
      %s17 = sshll.u32 [#allocation2], 4
      %s18 = int_to_ptr.vmem [resolvable:$true] %s17
      %20 = dma.hbm_to_vmem [thread:$0]  %s0, 128, %s18, [#allocation3]
    $region5: #{tpu_custom_call.1} parent=1 // pred_fallthru
      _
    // Predicated region
    $region6: #{tpu_custom_call.1} parent=1 // pred_check
      _
    $region7: #{tpu_custom_call.1} parent=1 // pred_check_branch
      %22 = sbr.rel (0) target = $region9
    $region8: #{tpu_custom_call.1} parent=1 // pred_region
      %s24 = ssub.s32 256, 256
      %25 = vsyncadd [#allocation6], %s24
      %s26 = sshll.u32 [#allocation5], 4
      %s27 = int_to_ptr.vmem [resolvable:$true] %s26
      %32 = dma.hbm_to_vmem [thread:$0]  %s1, 256, %s27, [#allocation6], 64, 64, 4
    $region9: #{tpu_custom_call.1} parent=1 // pred_fallthru
      _
    // Predicated region
    $region10: #{tpu_custom_call.1} parent=1 // pred_check
      _
    $region11: #{tpu_custom_call.1} parent=1 // pred_check_branch
      %34 = sbr.rel (0) target = $region13
    $region12: #{tpu_custom_call.1} parent=1 // pred_region
      _
    $region13: #{tpu_custom_call.1} parent=1 // pred_fallthru
      _
    // Predicated region
    $region14: #{tpu_custom_call.1} parent=1 // pred_check
      _
    $region15: #{tpu_custom_call.1} parent=1 // pred_check_branch
      %36 = sbr.rel (0) target = $region17
    $region16: #{tpu_custom_call.1} parent=1 // pred_region
      %37 = dma.done [#allocation3], 128
    $region17: #{tpu_custom_call.1} parent=1 // pred_fallthru
      _
    // Predicated region
    $region18: #{tpu_custom_call.1} parent=1 // pred_check
      _
    $region19: #{tpu_custom_call.1} parent=1 // pred_check_branch
      %39 = sbr.rel (0) target = $region21
    $region20: #{tpu_custom_call.1} parent=1 // pred_region
      %40 = dma.done [#allocation6], 256
    $region21: #{tpu_custom_call.1} parent=1 // pred_fallthru
      _
    %v42 = vld [vmem:[#allocation2] sm:$0xff]
    %v43 = vpack.c.bf16 %v42, %v42
    %v44 = vld [vmem:[#allocation5] sm:$0xf]
    %v45 = vld [vmem:[#allocation5 + $0x4] sm:$0xf]
    %v46 = vld [vmem:[#allocation5 + $0x8] sm:$0xf]
    %v47 = vld [vmem:[#allocation5 + $0xc] sm:$0xf]
    %v48 = vld [vmem:[%s2] sm:$0x1]
    %v50 = vlaneseq
    %v51 = vshrl.u32 %v50, 7
    %v52 = vsub.s32 0, %v51
    %v53 = vrot.slane %v48, %v52
    %v59 = vunpack.c.l.b16 %v44
    %v60 = vunpack.c.l.b16 %v45
    %v61 = vunpack.c.l.b16 %v46
    %v62 = vunpack.c.l.b16 %v47
    %v63 = vpack.c.b16 %v60, %v59
    %v64 = vpack.c.b16 %v62, %v61
    %vm67 = vcmask 261120
    %v69 = vsel %vm67, %v43, 0
    %71 = vmatprep.subr.bf16.mxu0 0
    %72 = vmatpush1.bf16.msra.mxu0 %v63
    %73 = vmatprep.subr.bf16.mxu0 0
    %74 = vmatpush1.bf16.msra.mxu0 %v64
    %75 = vmatprep.subr.bf16.mxu0 0
    %76 = vmatpush1.bf16.msra.mxu0 0
    %77 = vmatprep.subr.bf16.mxu0 0
    %78 = vmatpush1.bf16.msra.mxu0 0
    %79 = vmatprep.subr.bf16.mxu0 0
    %80 = vmatpush1.bf16.msra.mxu0 0
    %81 = vmatprep.subr.bf16.mxu0 0
    %82 = vmatpush1.bf16.msra.mxu0 0
    %83 = vmatprep.subr.bf16.mxu0 0
    %84 = vmatpush1.bf16.msra.mxu0 0
    %85 = vmatprep.subr.bf16.mxu0 0
    %86 = vmatpush1.bf16.msra.mxu0 0
    %87 = vmatprep.subr.bf16.mxu0 0
    %88 = vmatpush1.bf16.msra.mxu0 0
    %89 = vmatprep.subr.bf16.mxu0 0
    %90 = vmatpush1.bf16.msra.mxu0 0
    %91 = vmatprep.subr.bf16.mxu0 0
    %92 = vmatpush1.bf16.msra.mxu0 0
    %93 = vmatprep.subr.bf16.mxu0 0
    %94 = vmatpush1.bf16.msra.mxu0 0
    %95 = vmatprep.subr.bf16.mxu0 0
    %96 = vmatpush1.bf16.msra.mxu0 0
    %97 = vmatprep.subr.bf16.mxu0 0
    %98 = vmatpush1.bf16.msra.mxu0 0
    %99 = vmatprep.subr.bf16.mxu0 0
    %100 = vmatpush1.bf16.msra.mxu0 0
    %101 = vmatprep.subr.bf16.mxu0 0
    %102 = vmatpush1.bf16.msra.mxu0 0
    %103 = vmatprep.mubr.bf16.mxu0 0
    %104 = vmatmul.mubr.bf16.gmra.mrb[0].mxu0 %v69
    %v105 = vpop.f32.mrb[0].mxu0
    %v106 = vadd.f32 %v53, %v105
    %v107 = vpop.f32.mrb[0].mxu0
    %v108 = vpop.f32.mrb[0].mxu0
    %v109 = vpop.f32.mrb[0].mxu0
    %110 = vdwg.mxu0
    %v111 = vmax.f32 %v106, 0.0
    %112 = vst.msk [vmem:[#allocation7] sm:$0xff] %vm67, %v111
    // Predicated region
    $region22: #{tpu_custom_call.1} parent=1 // pred_check
      _
    $region23: #{tpu_custom_call.1} parent=1 // pred_check_branch
      %114 = sbr.rel (0) target = $region25
    $region24: #{tpu_custom_call.1} parent=1 // pred_region
      %s116 = ssub.s32 128, 128
      %117 = vsyncadd [#allocation4], %s116
      %s119 = sshll.u32 [#allocation7], 4
      %s120 = int_to_ptr.vmem [resolvable:$true] %s119
      %122 = dma.vmem_to_hbm [thread:$0]  %s120, 128, %s3, [#allocation4]
    $region25: #{tpu_custom_call.1} parent=1 // pred_fallthru
      _
    // Predicated region
    $region26: #{tpu_custom_call.1} parent=1 // pred_check
      _
    $region27: #{tpu_custom_call.1} parent=1 // pred_check_branch
      %124 = sbr.rel (0) target = $region29
    $region28: #{tpu_custom_call.1} parent=1 // pred_region
      %125 = dma.done [#allocation4], 128
    $region29: #{tpu_custom_call.1} parent=1 // pred_fallthru
      _
    %126 = vsyncpa [#allocation3], 1
    %127 = vsyncpa [#allocation6], 1
    %128 = vsyncpa [#allocation4], 1

</llo_original>
